<compile_context>
chip_gen: v7x
topology: tpu7x:2x2x1
jax: 0.10.0
libtpu: 0.0.40
codegen_flags: <defaults>
</compile_context>

<pallas_src>
import jax
import jax.numpy as jnp
from jax.experimental import pallas as pl
from jax.experimental.pallas import tpu as pltpu

INPUT_SIZE = 32
NUM_CLASSES = 10
HIDDEN = (100, 80, 40)   # torch layer widths (fcm1/fcm2/fcm3 outputs)
HPAD = 128               # lane-dense padded hidden width


# ------------------------------ Pallas kernel -------------------------------

def _desc_net_kernel(x_ref, w1_ref, b1_ref, w2_ref, b2_ref, w3_ref, b3_ref,
                     w4_ref, b4_ref, o_ref):
    """Fused fcm1 -> fcm2 -> fcm3 -> fcm4.

    Each fcm_i is Dropout (identity in eval) + Linear + ReLU; fcm4 is Linear.
    Weights are pre-transposed to (Din, Dout) and zero-padded to HPAD lanes,
    so intermediates stay in full 128-lane vregs; only the final
    (tile_n, num_classes) tile is stored.
    """
    h = x_ref[...]
    h = jnp.dot(h, w1_ref[...], preferred_element_type=jnp.float32) + b1_ref[...]
    h = jnp.maximum(h, 0.0)
    h = jnp.dot(h, w2_ref[...], preferred_element_type=jnp.float32) + b2_ref[...]
    h = jnp.maximum(h, 0.0)
    h = jnp.dot(h, w3_ref[...], preferred_element_type=jnp.float32) + b3_ref[...]
    h = jnp.maximum(h, 0.0)
    o_ref[...] = (jnp.dot(h, w4_ref[...], preferred_element_type=jnp.float32)
                  + b4_ref[...])


# ------------------------------ wrappers -------------------------------------

def _pick_tile_n(n, cap=1024):
    """Largest divisor of n that is <= cap and a multiple of 8 (or n itself)."""
    if n <= cap:
        return n
    for t in range(cap, 7, -8):
        if n % t == 0:
            return t
    return n


def pack_params(params):
    """One-time prepacking: transpose to (Din,Dout), pad hidden dims to HPAD,
    reshape biases.  Keeps all per-forward weight preprocessing out of the
    hot path."""
    (w1, b1), (w2, b2), (w3, b3), (w4, b4) = params

    def pad_to(a, rows, cols):
        r, c = a.shape
        return jnp.pad(a, ((0, rows - r), (0, cols - c)))

    din = w1.shape[1]
    nc = w4.shape[0]
    return {
        "w1": pad_to(w1.T, din, HPAD),
        "b1": pad_to(b1.reshape(1, -1), 1, HPAD),
        "w2": pad_to(w2.T, HPAD, HPAD),
        "b2": pad_to(b2.reshape(1, -1), 1, HPAD),
        "w3": pad_to(w3.T, HPAD, HPAD),
        "b3": pad_to(b3.reshape(1, -1), 1, HPAD),
        "w4": pad_to(w4.T, HPAD, nc),
        "b4": b4.reshape(1, nc),
    }


@jax.jit
def description_net_forward(packed, x):
    """x: (N, input_size) -> (N, num_classes)."""
    x = x.astype(jnp.float32)
    N, Din = x.shape
    nc = packed["w4"].shape[1]

    tile_n = _pick_tile_n(N)
    grid = (N // tile_n,)
    rep = lambda i: (0, 0)   # weights/biases replicated across batch tiles

    return pl.pallas_call(
        _desc_net_kernel,
        out_shape=jax.ShapeDtypeStruct((N, nc), jnp.float32),
        grid_spec=pltpu.PrefetchScalarGridSpec(
            num_scalar_prefetch=0,
            grid=grid,
            in_specs=[
                pl.BlockSpec((tile_n, Din), lambda i: (i, 0)),
                pl.BlockSpec(packed["w1"].shape, rep),
                pl.BlockSpec(packed["b1"].shape, rep),
                pl.BlockSpec(packed["w2"].shape, rep),
                pl.BlockSpec(packed["b2"].shape, rep),
                pl.BlockSpec(packed["w3"].shape, rep),
                pl.BlockSpec(packed["b3"].shape, rep),
                pl.BlockSpec(packed["w4"].shape, rep),
                pl.BlockSpec(packed["b4"].shape, rep),
            ],
            out_specs=pl.BlockSpec((tile_n, nc), lambda i: (i, 0)),
        ),
        compiler_params=pltpu.CompilerParams(
            dimension_semantics=("parallel",)),
    )(x, packed["w1"], packed["b1"], packed["w2"], packed["b2"],
      packed["w3"], packed["b3"], packed["w4"], packed["b4"])


# ----------------------------- params & main ---------------------------------

def init_params(key, input_size, num_classes):
    """Torch-layout params: [(w,b)] with w (Dout, Din), b (Dout,)."""
    dims = [(input_size, HIDDEN[0]), (HIDDEN[0], HIDDEN[1]),
            (HIDDEN[1], HIDDEN[2]), (HIDDEN[2], num_classes)]
    params = []
    for din, dout in dims:
        key, k1, k2 = jax.random.split(key, 3)
        w = jax.random.normal(k1, (dout, din), jnp.float32) / jnp.sqrt(float(din))
        b = jax.random.normal(k2, (dout,), jnp.float32) * 0.01
        params.append((w, b))
    return params


if __name__ == "__main__":
    key = jax.random.PRNGKey(0)
    key, pkey, xkey = jax.random.split(key, 3)

    params = init_params(pkey, INPUT_SIZE, NUM_CLASSES)
    packed = pack_params(params)          # hoisted: done once, not per forward

    x = jax.random.normal(xkey, (4, INPUT_SIZE), jnp.float32)

    out = description_net_forward(packed, x)
    out = jax.block_until_ready(out)
    assert out.shape == (4, NUM_CLASSES)
    assert bool(jnp.all(jnp.isfinite(out)))

    # Pure-JAX reference (eval-mode: dropout = identity).
    ref = x
    for i, (w, b) in enumerate(params):
        ref = ref @ w.T + b
        if i < 3:
            ref = jnp.maximum(ref, 0.0)
    assert jnp.allclose(out, ref, atol=1e-3, rtol=1e-3)

    print("KERNEL_OK")
</pallas_src>

<mosaic_0001>
module attributes {stable_mosaic.version = 11 : i64} {
  func.func @_desc_net_kernel(%arg0: i32, %arg1: memref<4x32xf32, #tpu.memory_space<vmem>>, %arg2: memref<32x128xf32, #tpu.memory_space<vmem>>, %arg3: memref<1x128xf32, #tpu.memory_space<vmem>>, %arg4: memref<128x128xf32, #tpu.memory_space<vmem>>, %arg5: memref<1x128xf32, #tpu.memory_space<vmem>>, %arg6: memref<128x128xf32, #tpu.memory_space<vmem>>, %arg7: memref<1x128xf32, #tpu.memory_space<vmem>>, %arg8: memref<128x10xf32, #tpu.memory_space<vmem>>, %arg9: memref<1x10xf32, #tpu.memory_space<vmem>>, %arg10: memref<4x10xf32, #tpu.memory_space<vmem>>) attributes {dimension_semantics = [#tpu.dimension_semantics<parallel>], iteration_bounds = array<i64: 1>, scalar_prefetch = 0 : i64, scratch_operands = 0 : i64, tpu.core_type = #tpu.core_type<tc>, window_params = [{transform_indices = @transform_0, window_bounds = array<i64: 4, 32>}, {pipeline_mode = #tpu.pipeline_mode<synchronous>, transform_indices = @transform_1, window_bounds = array<i64: 32, 128>}, {pipeline_mode = #tpu.pipeline_mode<synchronous>, transform_indices = @transform_2, window_bounds = array<i64: 1, 128>}, {pipeline_mode = #tpu.pipeline_mode<synchronous>, transform_indices = @transform_3, window_bounds = array<i64: 128, 128>}, {pipeline_mode = #tpu.pipeline_mode<synchronous>, transform_indices = @transform_4, window_bounds = array<i64: 1, 128>}, {pipeline_mode = #tpu.pipeline_mode<synchronous>, transform_indices = @transform_5, window_bounds = array<i64: 128, 128>}, {pipeline_mode = #tpu.pipeline_mode<synchronous>, transform_indices = @transform_6, window_bounds = array<i64: 1, 128>}, {pipeline_mode = #tpu.pipeline_mode<synchronous>, transform_indices = @transform_7, window_bounds = array<i64: 128, 10>}, {pipeline_mode = #tpu.pipeline_mode<synchronous>, transform_indices = @transform_8, window_bounds = array<i64: 1, 10>}, {transform_indices = @transform_9, window_bounds = array<i64: 4, 10>}]} {
    %c0 = arith.constant 0 : index
    %c0_0 = arith.constant 0 : index
    %0 = vector.load %arg1[%c0, %c0_0] : memref<4x32xf32, #tpu.memory_space<vmem>>, vector<4x32xf32>
    %c0_1 = arith.constant 0 : index
    %c0_2 = arith.constant 0 : index
    %1 = vector.load %arg2[%c0_1, %c0_2] : memref<32x128xf32, #tpu.memory_space<vmem>>, vector<32x128xf32>
    %cst = arith.constant dense<0.000000e+00> : vector<4x128xf32>
    %2 = tpu.matmul %0, %1, %cst {dimension_numbers = #tpu.dot_dimension_numbers<[1], [0], [0], [1], [0, 0, 1, 1], [], []>} : vector<4x32xf32>, vector<32x128xf32>, vector<4x128xf32> -> vector<4x128xf32>
    %c0_3 = arith.constant 0 : index
    %c0_4 = arith.constant 0 : index
    %3 = vector.load %arg3[%c0_3, %c0_4] : memref<1x128xf32, #tpu.memory_space<vmem>>, vector<1x128xf32>
    %4 = vector.broadcast %3 : vector<1x128xf32> to vector<4x128xf32>
    %5 = arith.addf %2, %4 : vector<4x128xf32>
    %cst_5 = arith.constant 0.000000e+00 : f32
    %6 = vector.broadcast %cst_5 : f32 to vector<4x128xf32>
    %7 = arith.maximumf %5, %6 : vector<4x128xf32>
    %c0_6 = arith.constant 0 : index
    %c0_7 = arith.constant 0 : index
    %8 = vector.load %arg4[%c0_6, %c0_7] : memref<128x128xf32, #tpu.memory_space<vmem>>, vector<128x128xf32>
    %cst_8 = arith.constant dense<0.000000e+00> : vector<4x128xf32>
    %9 = tpu.matmul %7, %8, %cst_8 {dimension_numbers = #tpu.dot_dimension_numbers<[1], [0], [0], [1], [0, 0, 1, 1], [], []>} : vector<4x128xf32>, vector<128x128xf32>, vector<4x128xf32> -> vector<4x128xf32>
    %c0_9 = arith.constant 0 : index
    %c0_10 = arith.constant 0 : index
    %10 = vector.load %arg5[%c0_9, %c0_10] : memref<1x128xf32, #tpu.memory_space<vmem>>, vector<1x128xf32>
    %11 = vector.broadcast %10 : vector<1x128xf32> to vector<4x128xf32>
    %12 = arith.addf %9, %11 : vector<4x128xf32>
    %cst_11 = arith.constant 0.000000e+00 : f32
    %13 = vector.broadcast %cst_11 : f32 to vector<4x128xf32>
    %14 = arith.maximumf %12, %13 : vector<4x128xf32>
    %c0_12 = arith.constant 0 : index
    %c0_13 = arith.constant 0 : index
    %15 = vector.load %arg6[%c0_12, %c0_13] : memref<128x128xf32, #tpu.memory_space<vmem>>, vector<128x128xf32>
    %cst_14 = arith.constant dense<0.000000e+00> : vector<4x128xf32>
    %16 = tpu.matmul %14, %15, %cst_14 {dimension_numbers = #tpu.dot_dimension_numbers<[1], [0], [0], [1], [0, 0, 1, 1], [], []>} : vector<4x128xf32>, vector<128x128xf32>, vector<4x128xf32> -> vector<4x128xf32>
    %c0_15 = arith.constant 0 : index
    %c0_16 = arith.constant 0 : index
    %17 = vector.load %arg7[%c0_15, %c0_16] : memref<1x128xf32, #tpu.memory_space<vmem>>, vector<1x128xf32>
    %18 = vector.broadcast %17 : vector<1x128xf32> to vector<4x128xf32>
    %19 = arith.addf %16, %18 : vector<4x128xf32>
    %cst_17 = arith.constant 0.000000e+00 : f32
    %20 = vector.broadcast %cst_17 : f32 to vector<4x128xf32>
    %21 = arith.maximumf %19, %20 : vector<4x128xf32>
    %c0_18 = arith.constant 0 : index
    %c0_19 = arith.constant 0 : index
    %22 = vector.load %arg8[%c0_18, %c0_19] : memref<128x10xf32, #tpu.memory_space<vmem>>, vector<128x10xf32>
    %cst_20 = arith.constant dense<0.000000e+00> : vector<4x10xf32>
    %23 = tpu.matmul %21, %22, %cst_20 {dimension_numbers = #tpu.dot_dimension_numbers<[1], [0], [0], [1], [0, 0, 1, 1], [], []>} : vector<4x128xf32>, vector<128x10xf32>, vector<4x10xf32> -> vector<4x10xf32>
    %c0_21 = arith.constant 0 : index
    %c0_22 = arith.constant 0 : index
    %24 = vector.load %arg9[%c0_21, %c0_22] : memref<1x10xf32, #tpu.memory_space<vmem>>, vector<1x10xf32>
    %25 = vector.broadcast %24 : vector<1x10xf32> to vector<4x10xf32>
    %26 = arith.addf %23, %25 : vector<4x10xf32>
    %c0_23 = arith.constant 0 : index
    %c0_24 = arith.constant 0 : index
    %27 = vector.load %arg10[%c0_23, %c0_24] : memref<4x10xf32, #tpu.memory_space<vmem>>, vector<4x10xf32>
    tpu.vector_store %arg10[%c0_23, %c0_24], %26 {strides = array<i32>} : memref<4x10xf32, #tpu.memory_space<vmem>>, vector<4x10xf32>,
    return
  }
  func.func @transform_0(%arg0: i32) -> (i32, i32) {
    %c0_i32 = arith.constant 0 : i32
    %c0_i32_0 = arith.constant 0 : i32
    return %arg0, %c0_i32 : i32, i32
  }
  func.func @transform_1(%arg0: i32) -> (i32, i32) {
    %c0_i32 = arith.constant 0 : i32
    %c0_i32_0 = arith.constant 0 : i32
    %c0_i32_1 = arith.constant 0 : i32
    return %c0_i32, %c0_i32_0 : i32, i32
  }
  func.func @transform_2(%arg0: i32) -> (i32, i32) {
    %c0_i32 = arith.constant 0 : i32
    %c0_i32_0 = arith.constant 0 : i32
    %c0_i32_1 = arith.constant 0 : i32
    return %c0_i32, %c0_i32_0 : i32, i32
  }
  func.func @transform_3(%arg0: i32) -> (i32, i32) {
    %c0_i32 = arith.constant 0 : i32
    %c0_i32_0 = arith.constant 0 : i32
    %c0_i32_1 = arith.constant 0 : i32
    return %c0_i32, %c0_i32_0 : i32, i32
  }
  func.func @transform_4(%arg0: i32) -> (i32, i32) {
    %c0_i32 = arith.constant 0 : i32
    %c0_i32_0 = arith.constant 0 : i32
    %c0_i32_1 = arith.constant 0 : i32
    return %c0_i32, %c0_i32_0 : i32, i32
  }
  func.func @transform_5(%arg0: i32) -> (i32, i32) {
    %c0_i32 = arith.constant 0 : i32
    %c0_i32_0 = arith.constant 0 : i32
    %c0_i32_1 = arith.constant 0 : i32
    return %c0_i32, %c0_i32_0 : i32, i32
  }
  func.func @transform_6(%arg0: i32) -> (i32, i32) {
    %c0_i32 = arith.constant 0 : i32
    %c0_i32_0 = arith.constant 0 : i32
    %c0_i32_1 = arith.constant 0 : i32
    return %c0_i32, %c0_i32_0 : i32, i32
  }
  func.func @transform_7(%arg0: i32) -> (i32, i32) {
    %c0_i32 = arith.constant 0 : i32
    %c0_i32_0 = arith.constant 0 : i32
    %c0_i32_1 = arith.constant 0 : i32
    return %c0_i32, %c0_i32_0 : i32, i32
  }
  func.func @transform_8(%arg0: i32) -> (i32, i32) {
    %c0_i32 = arith.constant 0 : i32
    %c0_i32_0 = arith.constant 0 : i32
    %c0_i32_1 = arith.constant 0 : i32
    return %c0_i32, %c0_i32_0 : i32, i32
  }
  func.func @transform_9(%arg0: i32) -> (i32, i32) {
    %c0_i32 = arith.constant 0 : i32
    %c0_i32_0 = arith.constant 0 : i32
    return %arg0, %c0_i32 : i32, i32
  }
}

</mosaic_0001>

<llo_original>
// kernel: description_net_forward.1
$region0: #{description_net_forward.1}
  #allocation0 [shape = 'u32[]', space=smem, size = 0x4, offset = 0x4, fixed_abs, tag = 'smem constant byte address 0x4 - core index']
  #allocation1 [shape = 'u32[144,128]{1,0:T(1,128)}', space=vmem, size = 0x12000, scoped, tag = 'internal scratch']
  %s0 = inlined_call_operand.vmem [shape: f32[4,32], index: 0, kind: input, shape index: {}]
  %s1 = inlined_call_operand.vmem [shape: f32[32,128], index: 1, kind: input, shape index: {}]
  %s2 = inlined_call_operand.vmem [shape: f32[1,128], index: 2, kind: input, shape index: {}]
  %s3 = inlined_call_operand.vmem [shape: f32[128,128], index: 3, kind: input, shape index: {}]
  %s4 = inlined_call_operand.vmem [shape: f32[1,128], index: 4, kind: input, shape index: {}]
  %s5 = inlined_call_operand.hbm [shape: f32[128,128], index: 5, kind: input, shape index: {}]
  %s6 = inlined_call_operand.hbm [shape: f32[1,128], index: 6, kind: input, shape index: {}]
  %s7 = inlined_call_operand.vmem [shape: f32[128,10], index: 7, kind: input, shape index: {}]
  %s8 = inlined_call_operand.hbm [shape: f32[1,10], index: 8, kind: input, shape index: {}]
  %s9 = inlined_call_operand.hbm [shape: f32[4,10], index: 9, kind: output, shape index: {}]
  %s10 = sld [smem:[#allocation0]]
  $region58: #{description_net_forward.1} parent=0
    _
  %s12 = ssub.s32 1, %s10
  %s13 = scalar_select 0, %s12, %s10
  $region1: #{description_net_forward.1} parent=0
    #allocation2 [shape = 'u8[65536]{0}', space=vmem, size = 0x10000, scoped, tag = 'input window, operand 5, single buffered']
    #allocation3 [shape = 's32[1]{0}', space=sflag, size = 0x4, scoped, tag = 'scoped memory for description_net_forward.1']
    #allocation4 [shape = 's32[1]{0}', space=sflag, size = 0x4, scoped, tag = 'scoped memory for description_net_forward.1']
    #allocation5 [shape = 'u8[512]{0}', space=vmem, size = 0x400, scoped, tag = 'input window, operand 6, single buffered']
    #allocation6 [shape = 's32[1]{0}', space=sflag, size = 0x4, scoped, tag = 'scoped memory for description_net_forward.1']
    #allocation7 [shape = 'u8[512]{0}', space=vmem, size = 0x400, scoped, tag = 'input window, operand 8, single buffered']
    #allocation8 [shape = 'u8[2048]{0}', space=vmem, size = 0x800, scoped, tag = 'output window, operand 0, single buffered']
    %14 = vsyncpa [#allocation3], 0
    %15 = vsyncpa [#allocation6], 0
    %16 = vsyncpa [#allocation4], 0
    // Predicated region
    $region2: #{description_net_forward.1} parent=1 // pred_check
      _
    $region3: #{description_net_forward.1} parent=1 // pred_check_branch
      %18 = sbr.rel (0) target = $region5
    $region4: #{description_net_forward.1} parent=1 // pred_region
      _
    $region5: #{description_net_forward.1} parent=1 // pred_fallthru
      _
    // Predicated region
    $region6: #{description_net_forward.1} parent=1 // pred_check
      _
    $region7: #{description_net_forward.1} parent=1 // pred_check_branch
      %20 = sbr.rel (0) target = $region9
    $region8: #{description_net_forward.1} parent=1 // pred_region
      _
    $region9: #{description_net_forward.1} parent=1 // pred_fallthru
      _
    // Predicated region
    $region10: #{description_net_forward.1} parent=1 // pred_check
      _
    $region11: #{description_net_forward.1} parent=1 // pred_check_branch
      %22 = sbr.rel (0) target = $region13
    $region12: #{description_net_forward.1} parent=1 // pred_region
      _
    $region13: #{description_net_forward.1} parent=1 // pred_fallthru
      _
    // Predicated region
    $region14: #{description_net_forward.1} parent=1 // pred_check
      _
    $region15: #{description_net_forward.1} parent=1 // pred_check_branch
      %24 = sbr.rel (0) target = $region17
    $region16: #{description_net_forward.1} parent=1 // pred_region
      _
    $region17: #{description_net_forward.1} parent=1 // pred_fallthru
      _
    // Predicated region
    $region18: #{description_net_forward.1} parent=1 // pred_check
      _
    $region19: #{description_net_forward.1} parent=1 // pred_check_branch
      %26 = sbr.rel (0) target = $region21
    $region20: #{description_net_forward.1} parent=1 // pred_region
      _
    $region21: #{description_net_forward.1} parent=1 // pred_fallthru
      _
    // Predicated region
    $region22: #{description_net_forward.1} parent=1 // pred_check
      _
    $region23: #{description_net_forward.1} parent=1 // pred_check_branch
      %28 = sbr.rel (0) target = $region25
    $region24: #{description_net_forward.1} parent=1 // pred_region
      %s30 = ssub.s32 2048, 2048
      %31 = vsyncadd [#allocation3], %s30
      %s32 = sshll.u32 [#allocation2], 4
      %s33 = int_to_ptr.vmem [resolvable:$true] %s32
      %38 = dma.hbm_to_vmem [thread:$0]  %s5, 2048, %s33, [#allocation3], 128, 128, 8
    $region25: #{description_net_forward.1} parent=1 // pred_fallthru
      _
    // Predicated region
    $region26: #{description_net_forward.1} parent=1 // pred_check
      _
    $region27: #{description_net_forward.1} parent=1 // pred_check_branch
      %40 = sbr.rel (0) target = $region29
    $region28: #{description_net_forward.1} parent=1 // pred_region
      %s42 = ssub.s32 16, 16
      %43 = vsyncadd [#allocation6], %s42
      %s45 = sshll.u32 [#allocation5], 4
      %s46 = int_to_ptr.vmem [resolvable:$true] %s45
      %48 = dma.hbm_to_vmem [thread:$0]  %s6, 16, %s46, [#allocation6]
    $region29: #{description_net_forward.1} parent=1 // pred_fallthru
      _
    // Predicated region
    $region30: #{description_net_forward.1} parent=1 // pred_check
      _
    $region31: #{description_net_forward.1} parent=1 // pred_check_branch
      %50 = sbr.rel (0) target = $region33
    $region32: #{description_net_forward.1} parent=1 // pred_region
      _
    $region33: #{description_net_forward.1} parent=1 // pred_fallthru
      _
    // Predicated region
    $region34: #{description_net_forward.1} parent=1 // pred_check
      _
    $region35: #{description_net_forward.1} parent=1 // pred_check_branch
      %52 = sbr.rel (0) target = $region37
    $region36: #{description_net_forward.1} parent=1 // pred_region
      %s54 = ssub.s32 16, 16
      %55 = vsyncadd [#allocation6], %s54
      %s57 = sshll.u32 [#allocation7], 4
      %s58 = int_to_ptr.vmem [resolvable:$true] %s57
      %60 = dma.hbm_to_vmem [thread:$0]  %s8, 16, %s58, [#allocation6]
    $region37: #{description_net_forward.1} parent=1 // pred_fallthru
      _
    // Predicated region
    $region38: #{description_net_forward.1} parent=1 // pred_check
      _
    $region39: #{description_net_forward.1} parent=1 // pred_check_branch
      %62 = sbr.rel (0) target = $region41
    $region40: #{description_net_forward.1} parent=1 // pred_region
      %63 = dma.done [#allocation3], 2048
    $region41: #{description_net_forward.1} parent=1 // pred_fallthru
      _
    // Predicated region
    $region42: #{description_net_forward.1} parent=1 // pred_check
      _
    $region43: #{description_net_forward.1} parent=1 // pred_check_branch
      %65 = sbr.rel (0) target = $region45
    $region44: #{description_net_forward.1} parent=1 // pred_region
      %66 = dma.done [#allocation6], 16
    $region45: #{description_net_forward.1} parent=1 // pred_fallthru
      _
    // Predicated region
    $region46: #{description_net_forward.1} parent=1 // pred_check
      _
    $region47: #{description_net_forward.1} parent=1 // pred_check_branch
      %68 = sbr.rel (0) target = $region49
    $region48: #{description_net_forward.1} parent=1 // pred_region
      %69 = dma.done [#allocation6], 16
    $region49: #{description_net_forward.1} parent=1 // pred_fallthru
      _
    %v70 = vld [vmem:[%s0] sm:$0xf]
    %v71 = vld [vmem:[%s1] sm:$0xff]
    %v72 = vld [vmem:[%s1 + $0x8] sm:$0xff]
    %v73 = vld [vmem:[%s1 + $0x10] sm:$0xff]
    %v74 = vld [vmem:[%s1 + $0x18] sm:$0xff]
    %v75 = vld [vmem:[%s2] sm:$0x1]
    %v77 = vlaneseq
    %v78 = vshrl.u32 %v77, 7
    %v79 = vsub.s32 0, %v78
    %v80 = vrot.slane %v75, %v79
    %vm82 = vcmask 261120
    %v84 = vsel %vm82, %v70, 0
    %86 = vmatprep.subr.mxu0 0.0
    %87 = vmatpush1.msra.mxu0 %v71
    %88 = vmatprep.subr.mxu0 0.0
    %89 = vmatpush1.msra.mxu0 %v72
    %90 = vmatprep.subr.mxu0 0.0
    %91 = vmatpush1.msra.mxu0 %v73
    %92 = vmatprep.subr.mxu0 0.0
    %93 = vmatpush1.msra.mxu0 %v74
    %94 = vmatprep.subr.mxu0 0.0
    %95 = vmatpush1.msra.mxu0 0.0
    %96 = vmatprep.subr.mxu0 0.0
    %97 = vmatpush1.msra.mxu0 0.0
    %98 = vmatprep.subr.mxu0 0.0
    %99 = vmatpush1.msra.mxu0 0.0
    %100 = vmatprep.subr.mxu0 0.0
    %101 = vmatpush1.msra.mxu0 0.0
    %102 = vmatprep.subr.mxu0 0.0
    %103 = vmatpush1.msra.mxu0 0.0
    %104 = vmatprep.subr.mxu0 0.0
    %105 = vmatpush1.msra.mxu0 0.0
    %106 = vmatprep.subr.mxu0 0.0
    %107 = vmatpush1.msra.mxu0 0.0
    %108 = vmatprep.subr.mxu0 0.0
    %109 = vmatpush1.msra.mxu0 0.0
    %110 = vmatprep.subr.mxu0 0.0
    %111 = vmatpush1.msra.mxu0 0.0
    %112 = vmatprep.subr.mxu0 0.0
    %113 = vmatpush1.msra.mxu0 0.0
    %114 = vmatprep.subr.mxu0 0.0
    %115 = vmatpush1.msra.mxu0 0.0
    %116 = vmatprep.subr.mxu0 0.0
    %117 = vmatpush1.msra.mxu0 0.0
    %118 = vmatprep.subr.mxu0 0.0
    %119 = vmatpush1.msra.mxu0 0.0
    %120 = vmatprep.subr.mxu0 0.0
    %121 = vmatpush1.msra.mxu0 0.0
    %122 = vmatprep.subr.mxu0 0.0
    %123 = vmatpush1.msra.mxu0 0.0
    %124 = vmatprep.subr.mxu0 0.0
    %125 = vmatpush1.msra.mxu0 0.0
    %126 = vmatprep.subr.mxu0 0.0
    %127 = vmatpush1.msra.mxu0 0.0
    %128 = vmatprep.subr.mxu0 0.0
    %129 = vmatpush1.msra.mxu0 0.0
    %130 = vmatprep.subr.mxu0 0.0
    %131 = vmatpush1.msra.mxu0 0.0
    %132 = vmatprep.subr.mxu0 0.0
    %133 = vmatpush1.msra.mxu0 0.0
    %134 = vmatprep.subr.mxu0 0.0
    %135 = vmatpush1.msra.mxu0 0.0
    %136 = vmatprep.subr.mxu0 0.0
    %137 = vmatpush1.msra.mxu0 0.0
    %138 = vmatprep.subr.mxu0 0.0
    %139 = vmatpush1.msra.mxu0 0.0
    %140 = vmatprep.subr.mxu0 0.0
    %141 = vmatpush1.msra.mxu0 0.0
    %142 = vmatprep.subr.mxu0 0.0
    %143 = vmatpush1.msra.mxu0 0.0
    %144 = vmatprep.subr.mxu0 0.0
    %145 = vmatpush1.msra.mxu0 0.0
    %146 = vmatprep.subr.mxu0 0.0
    %147 = vmatpush1.msra.mxu0 0.0
    %148 = vmatprep.subr.mxu0 0.0
    %149 = vmatpush1.msra.mxu0 0.0
    %150 = vmatprep.mubr.f32.mxu0 0.0
    %151 = vmatmul.mubr.f32.gmra.mrb[0].mxu0 %v84
    %v152 = vpop.f32.mrb[0].mxu0
    %v153 = vadd.f32 %v80, %v152
    %v154 = vpop.f32.mrb[0].mxu0
    %155 = vdwg.mxu0
    %v156 = vmax.f32 %v153, 0.0
    %v157 = vld [vmem:[%s3] sm:$0xff]
    %v158 = vld [vmem:[%s3 + $0x8] sm:$0xff]
    %v159 = vld [vmem:[%s3 + $0x10] sm:$0xff]
    %v160 = vld [vmem:[%s3 + $0x18] sm:$0xff]
    %v161 = vld [vmem:[%s3 + $0x20] sm:$0xff]
    %v162 = vld [vmem:[%s3 + $0x28] sm:$0xff]
    %v163 = vld [vmem:[%s3 + $0x30] sm:$0xff]
    %v164 = vld [vmem:[%s3 + $0x38] sm:$0xff]
    %v165 = vld [vmem:[%s3 + $0x40] sm:$0xff]
    %v166 = vld [vmem:[%s3 + $0x48] sm:$0xff]
    %v167 = vld [vmem:[%s3 + $0x50] sm:$0xff]
    %v168 = vld [vmem:[%s3 + $0x58] sm:$0xff]
    %v169 = vld [vmem:[%s3 + $0x60] sm:$0xff]
    %v170 = vld [vmem:[%s3 + $0x68] sm:$0xff]
    %v171 = vld [vmem:[%s3 + $0x70] sm:$0xff]
    %v172 = vld [vmem:[%s3 + $0x78] sm:$0xff]
    %v173 = vld [vmem:[%s4] sm:$0x1]
    %v175 = vlaneseq
    %v176 = vshrl.u32 %v175, 7
    %v177 = vsub.s32 0, %v176
    %v178 = vrot.slane %v173, %v177
    %180 = vmatprep.subr.mxu0 0.0
    %181 = vmatpush1.msra.mxu0 %v157
    %182 = vmatprep.subr.mxu0 0.0
    %183 = vmatpush1.msra.mxu0 %v158
    %184 = vmatprep.subr.mxu0 0.0
    %185 = vmatpush1.msra.mxu0 %v159
    %186 = vmatprep.subr.mxu0 0.0
    %187 = vmatpush1.msra.mxu0 %v160
    %188 = vmatprep.subr.mxu0 0.0
    %189 = vmatpush1.msra.mxu0 %v161
    %190 = vmatprep.subr.mxu0 0.0
    %191 = vmatpush1.msra.mxu0 %v162
    %192 = vmatprep.subr.mxu0 0.0
    %193 = vmatpush1.msra.mxu0 %v163
    %194 = vmatprep.subr.mxu0 0.0
    %195 = vmatpush1.msra.mxu0 %v164
    %196 = vmatprep.subr.mxu0 0.0
    %197 = vmatpush1.msra.mxu0 %v165
    %198 = vmatprep.subr.mxu0 0.0
    %199 = vmatpush1.msra.mxu0 %v166
    %200 = vmatprep.subr.mxu0 0.0
    %201 = vmatpush1.msra.mxu0 %v167
    %202 = vmatprep.subr.mxu0 0.0
    %203 = vmatpush1.msra.mxu0 %v168
    %204 = vmatprep.subr.mxu0 0.0
    %205 = vmatpush1.msra.mxu0 %v169
    %206 = vmatprep.subr.mxu0 0.0
    %207 = vmatpush1.msra.mxu0 %v170
    %208 = vmatprep.subr.mxu0 0.0
    %209 = vmatpush1.msra.mxu0 %v171
    %210 = vmatprep.subr.mxu0 0.0
    %211 = vmatpush1.msra.mxu0 %v172
    %212 = vmatprep.subr.mxu0 0.0
    %213 = vmatpush1.msra.mxu0 0.0
    %214 = vmatprep.subr.mxu0 0.0
    %215 = vmatpush1.msra.mxu0 0.0
    %216 = vmatprep.subr.mxu0 0.0
    %217 = vmatpush1.msra.mxu0 0.0
    %218 = vmatprep.subr.mxu0 0.0
    %219 = vmatpush1.msra.mxu0 0.0
    %220 = vmatprep.subr.mxu0 0.0
    %221 = vmatpush1.msra.mxu0 0.0
    %222 = vmatprep.subr.mxu0 0.0
    %223 = vmatpush1.msra.mxu0 0.0
    %224 = vmatprep.subr.mxu0 0.0
    %225 = vmatpush1.msra.mxu0 0.0
    %226 = vmatprep.subr.mxu0 0.0
    %227 = vmatpush1.msra.mxu0 0.0
    %228 = vmatprep.subr.mxu0 0.0
    %229 = vmatpush1.msra.mxu0 0.0
    %230 = vmatprep.subr.mxu0 0.0
    %231 = vmatpush1.msra.mxu0 0.0
    %232 = vmatprep.subr.mxu0 0.0
    %233 = vmatpush1.msra.mxu0 0.0
    %234 = vmatprep.subr.mxu0 0.0
    %235 = vmatpush1.msra.mxu0 0.0
    %236 = vmatprep.subr.mxu0 0.0
    %237 = vmatpush1.msra.mxu0 0.0
    %238 = vmatprep.subr.mxu0 0.0
    %239 = vmatpush1.msra.mxu0 0.0
    %240 = vmatprep.subr.mxu0 0.0
    %241 = vmatpush1.msra.mxu0 0.0
    %242 = vmatprep.subr.mxu0 0.0
    %243 = vmatpush1.msra.mxu0 0.0
    %244 = vmatprep.mubr.f32.mxu0 0.0
    %245 = vmatmul.mubr.f32.gmra.mrb[0].mxu0 %v156
    %v246 = vpop.f32.mrb[0].mxu0
    %v247 = vadd.f32 %v178, %v246
    %v248 = vpop.f32.mrb[0].mxu0
    %249 = vdwg.mxu0
    %v250 = vmax.f32 %v247, 0.0
    %v251 = vld [vmem:[#allocation2] sm:$0xff]
    %v252 = vld [vmem:[#allocation2 + $0x8] sm:$0xff]
    %v253 = vld [vmem:[#allocation2 + $0x10] sm:$0xff]
    %v254 = vld [vmem:[#allocation2 + $0x18] sm:$0xff]
    %v255 = vld [vmem:[#allocation2 + $0x20] sm:$0xff]
    %v256 = vld [vmem:[#allocation2 + $0x28] sm:$0xff]
    %v257 = vld [vmem:[#allocation2 + $0x30] sm:$0xff]
    %v258 = vld [vmem:[#allocation2 + $0x38] sm:$0xff]
    %v259 = vld [vmem:[#allocation2 + $0x40] sm:$0xff]
    %v260 = vld [vmem:[#allocation2 + $0x48] sm:$0xff]
    %v261 = vld [vmem:[#allocation2 + $0x50] sm:$0xff]
    %v262 = vld [vmem:[#allocation2 + $0x58] sm:$0xff]
    %v263 = vld [vmem:[#allocation2 + $0x60] sm:$0xff]
    %v264 = vld [vmem:[#allocation2 + $0x68] sm:$0xff]
    %v265 = vld [vmem:[#allocation2 + $0x70] sm:$0xff]
    %v266 = vld [vmem:[#allocation2 + $0x78] sm:$0xff]
    %v267 = vld [vmem:[#allocation5] sm:$0x1]
    %v269 = vlaneseq
    %v270 = vshrl.u32 %v269, 7
    %v271 = vsub.s32 0, %v270
    %v272 = vrot.slane %v267, %v271
    %274 = vmatprep.subr.mxu0 0.0
    %275 = vmatpush1.msra.mxu0 %v251
    %276 = vmatprep.subr.mxu0 0.0
    %277 = vmatpush1.msra.mxu0 %v252
    %278 = vmatprep.subr.mxu0 0.0
    %279 = vmatpush1.msra.mxu0 %v253
    %280 = vmatprep.subr.mxu0 0.0
    %281 = vmatpush1.msra.mxu0 %v254
    %282 = vmatprep.subr.mxu0 0.0
    %283 = vmatpush1.msra.mxu0 %v255
    %284 = vmatprep.subr.mxu0 0.0
    %285 = vmatpush1.msra.mxu0 %v256
    %286 = vmatprep.subr.mxu0 0.0
    %287 = vmatpush1.msra.mxu0 %v257
    %288 = vmatprep.subr.mxu0 0.0
    %289 = vmatpush1.msra.mxu0 %v258
    %290 = vmatprep.subr.mxu0 0.0
    %291 = vmatpush1.msra.mxu0 %v259
    %292 = vmatprep.subr.mxu0 0.0
    %293 = vmatpush1.msra.mxu0 %v260
    %294 = vmatprep.subr.mxu0 0.0
    %295 = vmatpush1.msra.mxu0 %v261
    %296 = vmatprep.subr.mxu0 0.0
    %297 = vmatpush1.msra.mxu0 %v262
    %298 = vmatprep.subr.mxu0 0.0
    %299 = vmatpush1.msra.mxu0 %v263
    %300 = vmatprep.subr.mxu0 0.0
    %301 = vmatpush1.msra.mxu0 %v264
    %302 = vmatprep.subr.mxu0 0.0
    %303 = vmatpush1.msra.mxu0 %v265
    %304 = vmatprep.subr.mxu0 0.0
    %305 = vmatpush1.msra.mxu0 %v266
    %306 = vmatprep.subr.mxu0 0.0
    %307 = vmatpush1.msra.mxu0 0.0
    %308 = vmatprep.subr.mxu0 0.0
    %309 = vmatpush1.msra.mxu0 0.0
    %310 = vmatprep.subr.mxu0 0.0
    %311 = vmatpush1.msra.mxu0 0.0
    %312 = vmatprep.subr.mxu0 0.0
    %313 = vmatpush1.msra.mxu0 0.0
    %314 = vmatprep.subr.mxu0 0.0
    %315 = vmatpush1.msra.mxu0 0.0
    %316 = vmatprep.subr.mxu0 0.0
    %317 = vmatpush1.msra.mxu0 0.0
    %318 = vmatprep.subr.mxu0 0.0
    %319 = vmatpush1.msra.mxu0 0.0
    %320 = vmatprep.subr.mxu0 0.0
    %321 = vmatpush1.msra.mxu0 0.0
    %322 = vmatprep.subr.mxu0 0.0
    %323 = vmatpush1.msra.mxu0 0.0
    %324 = vmatprep.subr.mxu0 0.0
    %325 = vmatpush1.msra.mxu0 0.0
    %326 = vmatprep.subr.mxu0 0.0
    %327 = vmatpush1.msra.mxu0 0.0
    %328 = vmatprep.subr.mxu0 0.0
    %329 = vmatpush1.msra.mxu0 0.0
    %330 = vmatprep.subr.mxu0 0.0
    %331 = vmatpush1.msra.mxu0 0.0
    %332 = vmatprep.subr.mxu0 0.0
    %333 = vmatpush1.msra.mxu0 0.0
    %334 = vmatprep.subr.mxu0 0.0
    %335 = vmatpush1.msra.mxu0 0.0
    %336 = vmatprep.subr.mxu0 0.0
    %337 = vmatpush1.msra.mxu0 0.0
    %338 = vmatprep.mubr.f32.mxu0 0.0
    %339 = vmatmul.mubr.f32.gmra.mrb[0].mxu0 %v250
    %v340 = vpop.f32.mrb[0].mxu0
    %v341 = vadd.f32 %v272, %v340
    %v342 = vpop.f32.mrb[0].mxu0
    %343 = vdwg.mxu0
    %v344 = vmax.f32 %v341, 0.0
    %v345 = vld [vmem:[%s7] sm:$0xff]
    %v346 = vld [vmem:[%s7 + $0x8] sm:$0xff]
    %v347 = vld [vmem:[%s7 + $0x10] sm:$0xff]
    %v348 = vld [vmem:[%s7 + $0x18] sm:$0xff]
    %v349 = vld [vmem:[%s7 + $0x20] sm:$0xff]
    %v350 = vld [vmem:[%s7 + $0x28] sm:$0xff]
    %v351 = vld [vmem:[%s7 + $0x30] sm:$0xff]
    %v352 = vld [vmem:[%s7 + $0x38] sm:$0xff]
    %v353 = vld [vmem:[%s7 + $0x40] sm:$0xff]
    %v354 = vld [vmem:[%s7 + $0x48] sm:$0xff]
    %v355 = vld [vmem:[%s7 + $0x50] sm:$0xff]
    %v356 = vld [vmem:[%s7 + $0x58] sm:$0xff]
    %v357 = vld [vmem:[%s7 + $0x60] sm:$0xff]
    %v358 = vld [vmem:[%s7 + $0x68] sm:$0xff]
    %v359 = vld [vmem:[%s7 + $0x70] sm:$0xff]
    %v360 = vld [vmem:[%s7 + $0x78] sm:$0xff]
    %v361 = vld [vmem:[#allocation7] sm:$0x1]
    %v363 = vlaneseq
    %v364 = vshrl.u32 %v363, 7
    %v365 = vsub.s32 0, %v364
    %v366 = vrot.slane %v361, %v365
    %368 = vmatprep.subr.mxu0 0.0
    %369 = vmatpush1.msra.mxu0 %v345
    %370 = vmatprep.subr.mxu0 0.0
    %371 = vmatpush1.msra.mxu0 %v346
    %372 = vmatprep.subr.mxu0 0.0
    %373 = vmatpush1.msra.mxu0 %v347
    %374 = vmatprep.subr.mxu0 0.0
    %375 = vmatpush1.msra.mxu0 %v348
    %376 = vmatprep.subr.mxu0 0.0
    %377 = vmatpush1.msra.mxu0 %v349
    %378 = vmatprep.subr.mxu0 0.0
    %379 = vmatpush1.msra.mxu0 %v350
    %380 = vmatprep.subr.mxu0 0.0
    %381 = vmatpush1.msra.mxu0 %v351
    %382 = vmatprep.subr.mxu0 0.0
    %383 = vmatpush1.msra.mxu0 %v352
    %384 = vmatprep.subr.mxu0 0.0
    %385 = vmatpush1.msra.mxu0 %v353
    %386 = vmatprep.subr.mxu0 0.0
    %387 = vmatpush1.msra.mxu0 %v354
    %388 = vmatprep.subr.mxu0 0.0
    %389 = vmatpush1.msra.mxu0 %v355
    %390 = vmatprep.subr.mxu0 0.0
    %391 = vmatpush1.msra.mxu0 %v356
    %392 = vmatprep.subr.mxu0 0.0
    %393 = vmatpush1.msra.mxu0 %v357
    %394 = vmatprep.subr.mxu0 0.0
    %395 = vmatpush1.msra.mxu0 %v358
    %396 = vmatprep.subr.mxu0 0.0
    %397 = vmatpush1.msra.mxu0 %v359
    %398 = vmatprep.subr.mxu0 0.0
    %399 = vmatpush1.msra.mxu0 %v360
    %400 = vmatprep.subr.mxu0 0.0
    %401 = vmatpush1.msra.mxu0 0.0
    %402 = vmatprep.subr.mxu0 0.0
    %403 = vmatpush1.msra.mxu0 0.0
    %404 = vmatprep.subr.mxu0 0.0
    %405 = vmatpush1.msra.mxu0 0.0
    %406 = vmatprep.subr.mxu0 0.0
    %407 = vmatpush1.msra.mxu0 0.0
    %408 = vmatprep.subr.mxu0 0.0
    %409 = vmatpush1.msra.mxu0 0.0
    %410 = vmatprep.subr.mxu0 0.0
    %411 = vmatpush1.msra.mxu0 0.0
    %412 = vmatprep.subr.mxu0 0.0
    %413 = vmatpush1.msra.mxu0 0.0
    %414 = vmatprep.subr.mxu0 0.0
    %415 = vmatpush1.msra.mxu0 0.0
    %416 = vmatprep.subr.mxu0 0.0
    %417 = vmatpush1.msra.mxu0 0.0
    %418 = vmatprep.subr.mxu0 0.0
    %419 = vmatpush1.msra.mxu0 0.0
    %420 = vmatprep.subr.mxu0 0.0
    %421 = vmatpush1.msra.mxu0 0.0
    %422 = vmatprep.subr.mxu0 0.0
    %423 = vmatpush1.msra.mxu0 0.0
    %424 = vmatprep.subr.mxu0 0.0
    %425 = vmatpush1.msra.mxu0 0.0
    %426 = vmatprep.subr.mxu0 0.0
    %427 = vmatpush1.msra.mxu0 0.0
    %428 = vmatprep.subr.mxu0 0.0
    %429 = vmatpush1.msra.mxu0 0.0
    %430 = vmatprep.subr.mxu0 0.0
    %431 = vmatpush1.msra.mxu0 0.0
    %432 = vmatprep.mubr.f32.mxu0 0.0
    %433 = vmatmul.mubr.f32.gmra.mrb[0].mxu0 %v344
    %v434 = vpop.f32.mrb[0].mxu0
    %v435 = vadd.f32 %v366, %v434
    %v436 = vpop.f32.mrb[0].mxu0
    %437 = vdwg.mxu0
    %vm438 = vcmask 76800
    %439 = vst.msk [vmem:[#allocation8] sm:$0xf] %vm438, %v435
    // Predicated region
    $region50: #{description_net_forward.1} parent=1 // pred_check
      _
    $region51: #{description_net_forward.1} parent=1 // pred_check_branch
      %441 = sbr.rel (0) target = $region53
    $region52: #{description_net_forward.1} parent=1 // pred_region
      %s443 = ssub.s32 64, 64
      %444 = vsyncadd [#allocation4], %s443
      %s446 = sshll.u32 [#allocation8], 4
      %s447 = int_to_ptr.vmem [resolvable:$true] %s446
      %449 = dma.vmem_to_hbm [thread:$0]  %s447, 64, %s9, [#allocation4]
    $region53: #{description_net_forward.1} parent=1 // pred_fallthru
      _
    // Predicated region
    $region54: #{description_net_forward.1} parent=1 // pred_check
      _
    $region55: #{description_net_forward.1} parent=1 // pred_check_branch
      %451 = sbr.rel (0) target = $region57
    $region56: #{description_net_forward.1} parent=1 // pred_region
      %452 = dma.done [#allocation4], 64
    $region57: #{description_net_forward.1} parent=1 // pred_fallthru
      _
    %453 = vsyncpa [#allocation3], 1
    %454 = vsyncpa [#allocation6], 1
    %455 = vsyncpa [#allocation4], 1

</llo_original>
